<compile_context>
chip_gen: v7x
topology: tpu7x:2x2x1
jax: 0.10.0
libtpu: 0.0.40
codegen_flags: <defaults>
</compile_context>

<pallas_src>
import functools

import jax
import jax.numpy as jnp
from jax.experimental import pallas as pl
from jax.experimental.pallas import tpu as pltpu


# ---------------------------------------------------------------------------
# Kernel: one batch tile of the (exactly folded) MLP + sigmoid.
# ---------------------------------------------------------------------------
def discriminator_kernel(x_ref, w_ref, b_ref, out_ref):
    """x_ref: (tb, K) f32; w_ref: (1, K) f32; b_ref: (1, 1) f32; out: (tb, 1) f32."""
    x = x_ref[...]                                   # (tb, K) f32, straight from HBM
    # Folded 4-layer affine map: VPU multiply (sublane-broadcast of w) +
    # cross-lane reduction (XLU). No MXU pass, no dtype down-casts.
    logit = jnp.sum(x * w_ref[...], axis=-1, keepdims=True) + b_ref[...]   # (tb, 1)
    # sigmoid: exp on the EUP, exact reciprocal.
    out_ref[...] = pl.reciprocal(1.0 + jnp.exp(-logit)).astype(out_ref.dtype)


# ---------------------------------------------------------------------------
# Wrapper
# ---------------------------------------------------------------------------
def _round_up(n, m):
    return ((n + m - 1) // m) * m


def _pick_tb(batch):
    """Batch tile: full batch for small B; else <=1024 wide with >=2 grid steps
    (so v7x's two TensorCores both get work). Multiples of 256 keep sublane
    alignment and good DMA granularity."""
    if batch <= 512:
        return batch
    return min(1024, _round_up(pl.cdiv(batch, 2), 256))


@functools.partial(jax.jit, static_argnames=("tb",))
def _discriminator_forward(x, params, *, tb):
    B, K = x.shape
    (w1, b1), (w2, b2), (w3, b3), (w4, b4) = params
    f32 = jnp.float32
    w1, w2, w3, w4 = (w.astype(f32) for w in (w1, w2, w3, w4))
    b1, b2, b3, b4 = (b.astype(f32) for b in (b1, b2, b3, b4))

    # Exact f32 fold of the 4 affine layers (no nonlinearities in between):
    #   y = W4(W3(W2(W1 x + b1) + b2) + b3) + b4
    #     = (W4 W3 W2 W1) x + [W4(W3(W2 b1 + b2) + b3) + b4]
    w_all = w4 @ w3 @ w2 @ w1                                   # (1, K)
    b_all = (w4 @ (w3 @ (w2 @ b1 + b2) + b3) + b4).reshape(1, 1)  # (1, 1)

    # Pad the batch only if the tile doesn't divide it (no pad for the common
    # serving case of B % tb == 0, and none for small B where tb == B).
    B_pad = _round_up(B, tb)
    x_p = x.astype(f32)
    if B_pad != B:
        x_p = jnp.pad(x_p, ((0, B_pad - B), (0, 0)))
    grid = (B_pad // tb,)

    # Explicit scoped-VMEM budget: double-buffered f32 input block + resident
    # folded weights + headroom.  32 MiB floor (> v5e's 16 MiB default), well
    # under v7x's 64 MiB physical VMEM per TensorCore for the default tb cap.
    x_block_bytes = tb * K * 4
    vmem_limit = int(min(100 * 1024 * 1024,
                         max(32 * 1024 * 1024, 3 * x_block_bytes + (2 << 20))))

    # Honest traffic/FLOP hint for XLA scheduling: x is read once as f32.
    cost = pl.CostEstimate(
        flops=2 * B_pad * K + 4 * B_pad,
        transcendentals=B_pad,
        bytes_accessed=(B_pad * K + K + 1) * 4 + B_pad * 4,
    )

    out = pl.pallas_call(
        discriminator_kernel,
        out_shape=jax.ShapeDtypeStruct((B_pad, 1), jnp.float32),
        grid=grid,
        in_specs=[
            # x: batch-major blocks, streamed per grid step.
            pl.BlockSpec((tb, K), lambda i: (i, 0)),
            # Folded weight / bias: full-array blocks with a constant index
            # map -> DMA'd into VMEM once, resident across the whole grid.
            pl.BlockSpec((1, K), lambda i: (0, 0)),
            pl.BlockSpec((1, 1), lambda i: (0, 0)),
        ],
        out_specs=pl.BlockSpec((tb, 1), lambda i: (i, 0)),
        compiler_params=pltpu.CompilerParams(
            dimension_semantics=("parallel",),      # megacore-friendly on v7x
            vmem_limit_bytes=vmem_limit,
        ),
        cost_estimate=cost,
    )(x_p, w_all, b_all)

    # Padded rows (if any) carry bias-only garbage through the sigmoid and are
    # sliced off here; never reduce over the padded region.
    return out[:B]


def discriminator_forward(x, params, *, tb=None):
    """x: (B, num_classes) f32; params: list of 4 (W, b) in torch nn.Linear
    layout (W: (out, in), b: (out,)). Returns (B, 1) sigmoid outputs."""
    B = x.shape[0]
    if tb is None:
        tb = _pick_tb(B)
    tb = int(tb)
    if tb < B and tb % 8 != 0:
        raise ValueError("tb must be a multiple of 8 when it tiles the batch")
    return _discriminator_forward(x, params, tb=tb)


# ---------------------------------------------------------------------------
# Deterministic parameter init, mirroring _initialize_weights:
#   nn.Linear: weight ~ N(0, 0.01) with shape (out, in), bias = 0
# ---------------------------------------------------------------------------
def init_params(key, num_classes=1000):
    filters = [num_classes, 128, 256, 128, 1]
    params = []
    for i in range(4):
        key, wk = jax.random.split(key)
        w = 0.01 * jax.random.normal(
            wk, (filters[i + 1], filters[i]), dtype=jnp.float32)
        b = jnp.zeros((filters[i + 1],), dtype=jnp.float32)
        params.append((w, b))
    return params


def reference_forward(x, params):
    h = x
    for (w, b) in params:
        h = h @ w.T + b
    return jax.nn.sigmoid(h)


if __name__ == "__main__":
    key = jax.random.PRNGKey(0)
    key, xk = jax.random.split(key)

    num_classes = 1000
    batch = 4
    x = jax.random.normal(xk, (batch, num_classes), dtype=jnp.float32)
    params = init_params(key, num_classes=num_classes)

    out = discriminator_forward(x, params)
    out = jax.block_until_ready(out)

    ref = reference_forward(x, params)
    assert out.shape == (batch, 1), out.shape
    # All-f32 path (fold + kernel): only summation-order differences remain.
    err = float(jnp.max(jnp.abs(out - ref)))
    assert jnp.allclose(out, ref, atol=1e-4, rtol=1e-4), f"max abs err {err}"

    print("KERNEL_OK")
</pallas_src>

<mosaic_0001>
module attributes {stable_mosaic.version = 11 : i64} {
  func.func @discriminator_kernel(%arg0: i32, %arg1: memref<4x1000xf32, #tpu.memory_space<vmem>>, %arg2: memref<1x1000xf32, #tpu.memory_space<vmem>>, %arg3: memref<1x1xf32, #tpu.memory_space<vmem>>, %arg4: memref<4x1xf32, #tpu.memory_space<vmem>>) attributes {dimension_semantics = [#tpu.dimension_semantics<parallel>], iteration_bounds = array<i64: 1>, scalar_prefetch = 0 : i64, scratch_operands = 0 : i64, tpu.core_type = #tpu.core_type<tc>, window_params = [{transform_indices = @transform_0, window_bounds = array<i64: 4, 1000>}, {pipeline_mode = #tpu.pipeline_mode<synchronous>, transform_indices = @transform_1, window_bounds = array<i64: 1, 1000>}, {pipeline_mode = #tpu.pipeline_mode<synchronous>, transform_indices = @transform_2, window_bounds = array<i64: 1, 1>}, {transform_indices = @transform_3, window_bounds = array<i64: 4, 1>}]} {
    %c0 = arith.constant 0 : index
    %c0_0 = arith.constant 0 : index
    %0 = vector.load %arg1[%c0, %c0_0] : memref<4x1000xf32, #tpu.memory_space<vmem>>, vector<4x1000xf32>
    %c0_1 = arith.constant 0 : index
    %c0_2 = arith.constant 0 : index
    %1 = vector.load %arg2[%c0_1, %c0_2] : memref<1x1000xf32, #tpu.memory_space<vmem>>, vector<1x1000xf32>
    %2 = vector.broadcast %1 : vector<1x1000xf32> to vector<4x1000xf32>
    %3 = arith.mulf %0, %2 : vector<4x1000xf32>
    %cst = arith.constant dense<0.000000e+00> : vector<4xf32>
    %4 = vector.multi_reduction <add>, %3, %cst [1] : vector<4x1000xf32> to vector<4xf32>
    %5 = vector.shape_cast %4 : vector<4xf32> to vector<4x1xf32>
    %c0_3 = arith.constant 0 : index
    %c0_4 = arith.constant 0 : index
    %6 = vector.load %arg3[%c0_3, %c0_4] : memref<1x1xf32, #tpu.memory_space<vmem>>, vector<1x1xf32>
    %7 = vector.broadcast %6 : vector<1x1xf32> to vector<4x1xf32>
    %8 = arith.addf %5, %7 : vector<4x1xf32>
    %cst_5 = arith.constant 0.000000e+00 : f32
    %9 = vector.broadcast %cst_5 : f32 to vector<4x1xf32>
    %10 = arith.subf %9, %8 : vector<4x1xf32>
    %11 = math.exp %10 : vector<4x1xf32>
    %cst_6 = arith.constant 1.000000e+00 : f32
    %12 = vector.broadcast %cst_6 : f32 to vector<4x1xf32>
    %13 = arith.addf %12, %11 : vector<4x1xf32>
    %14 = tpu.reciprocal %13 : vector<4x1xf32> -> vector<4x1xf32>
    %c0_7 = arith.constant 0 : index
    %c0_8 = arith.constant 0 : index
    %15 = vector.load %arg4[%c0_7, %c0_8] : memref<4x1xf32, #tpu.memory_space<vmem>>, vector<4x1xf32>
    tpu.vector_store %arg4[%c0_7, %c0_8], %14 {strides = array<i32>} : memref<4x1xf32, #tpu.memory_space<vmem>>, vector<4x1xf32>,
    return
  }
  func.func @transform_0(%arg0: i32) -> (i32, i32) {
    %c0_i32 = arith.constant 0 : i32
    %c0_i32_0 = arith.constant 0 : i32
    return %arg0, %c0_i32 : i32, i32
  }
  func.func @transform_1(%arg0: i32) -> (i32, i32) {
    %c0_i32 = arith.constant 0 : i32
    %c0_i32_0 = arith.constant 0 : i32
    %c0_i32_1 = arith.constant 0 : i32
    return %c0_i32, %c0_i32_0 : i32, i32
  }
  func.func @transform_2(%arg0: i32) -> (i32, i32) {
    %c0_i32 = arith.constant 0 : i32
    %c0_i32_0 = arith.constant 0 : i32
    %c0_i32_1 = arith.constant 0 : i32
    return %c0_i32, %c0_i32_0 : i32, i32
  }
  func.func @transform_3(%arg0: i32) -> (i32, i32) {
    %c0_i32 = arith.constant 0 : i32
    %c0_i32_0 = arith.constant 0 : i32
    return %arg0, %c0_i32 : i32, i32
  }
}

</mosaic_0001>

<llo_original>
// kernel: _discriminator_forward.1
$region0: #{_discriminator_forward.1}
  #allocation0 [shape = 'u32[]', space=smem, size = 0x4, offset = 0x4, fixed_abs, tag = 'smem constant byte address 0x4 - core index']
  #allocation1 [shape = 'u32[144,128]{1,0:T(1,128)}', space=vmem, size = 0x12000, scoped, tag = 'internal scratch']
  #allocation2 [shape = 'f32[1,1]{1,0:T(1,128)S(1)}', space=vmem, size = 0x200, scoped, tag = 'scoped memory for _discriminator_forward.1']
  %s0 = inlined_call_operand.vmem [shape: f32[4,1000], index: 0, kind: input, shape index: {}]
  %s1 = inlined_call_operand.vmem [shape: f32[1,1000], index: 1, kind: input, shape index: {}]
  %s2 = inlined_call_operand.<no memory space> [shape: f32[1,1], index: 2, kind: input, shape index: {}]
  %s3 = inlined_call_operand.vmem [shape: f32[4,1], index: 3, kind: output, shape index: {}]
  %s4 = sld [smem:[#allocation0]]
  $region22: #{_discriminator_forward.1} parent=0
    _
  %s6 = ssub.s32 1, %s4
  %s7 = scalar_select 0, %s6, %s4
  %v8 = vstv %s2
  %9 = vst [vmem:[#allocation2] sm:$0x1] %v8
  // Predicated region
  $region2: #{_discriminator_forward.1} parent=0 // pred_check
    _
  $region3: #{_discriminator_forward.1} parent=0 // pred_check_branch
    %11 = sbr.rel (0) target = $region5
  $region4: #{_discriminator_forward.1} parent=0 // pred_region
    _
  $region5: #{_discriminator_forward.1} parent=0 // pred_fallthru
    _
  // Predicated region
  $region6: #{_discriminator_forward.1} parent=0 // pred_check
    _
  $region7: #{_discriminator_forward.1} parent=0 // pred_check_branch
    %13 = sbr.rel (0) target = $region9
  $region8: #{_discriminator_forward.1} parent=0 // pred_region
    _
  $region9: #{_discriminator_forward.1} parent=0 // pred_fallthru
    _
  // Predicated region
  $region10: #{_discriminator_forward.1} parent=0 // pred_check
    _
  $region11: #{_discriminator_forward.1} parent=0 // pred_check_branch
    %15 = sbr.rel (0) target = $region13
  $region12: #{_discriminator_forward.1} parent=0 // pred_region
    _
  $region13: #{_discriminator_forward.1} parent=0 // pred_fallthru
    _
  %v16 = vld [vmem:[%s0] sm:$0xff]
  %v17 = vld [vmem:[%s0 + $0x8] sm:$0xff]
  %v18 = vld [vmem:[%s0 + $0x10] sm:$0xff]
  %v19 = vld [vmem:[%s0 + $0x18] sm:$0xff]
  %v20 = vld [vmem:[%s1] sm:$0xff]
  %v22 = vlaneseq
  %v23 = vshrl.u32 %v22, 7
  %v24 = vsub.s32 0, %v23
  %v25 = vrot.slane %v20, %v24
  %v26 = vlaneseq
  %v27 = vshrl.u32 %v26, 7
  %v28 = vsub.s32 1, %v27
  %v29 = vrot.slane %v20, %v28
  %v30 = vlaneseq
  %v31 = vshrl.u32 %v30, 7
  %v32 = vsub.s32 2, %v31
  %v33 = vrot.slane %v20, %v32
  %v34 = vlaneseq
  %v35 = vshrl.u32 %v34, 7
  %v36 = vsub.s32 3, %v35
  %v37 = vrot.slane %v20, %v36
  %v38 = vlaneseq
  %v39 = vshrl.u32 %v38, 7
  %v40 = vsub.s32 4, %v39
  %v41 = vrot.slane %v20, %v40
  %v42 = vlaneseq
  %v43 = vshrl.u32 %v42, 7
  %v44 = vsub.s32 5, %v43
  %v45 = vrot.slane %v20, %v44
  %v46 = vlaneseq
  %v47 = vshrl.u32 %v46, 7
  %v48 = vsub.s32 6, %v47
  %v49 = vrot.slane %v20, %v48
  %v50 = vlaneseq
  %v51 = vshrl.u32 %v50, 7
  %v52 = vsub.s32 7, %v51
  %v53 = vrot.slane %v20, %v52
  %v54 = vcombine.low %v25, %v29
  %v55 = vcombine.low %v33, %v37
  %v56 = vcombine.low %v41, %v45
  %v57 = vcombine.low %v49, %v53
  %v62 = vmul.f32 %v16, %v54
  %v63 = vmul.f32 %v17, %v55
  %v64 = vmul.f32 %v18, %v56
  %v65 = vmul.f32 %v19, %v57
  %v70 = vcombine.high %v62, %v62
  %v71 = vcombine.high %v63, %v63
  %v72 = vcombine.high %v64, %v64
  %v73 = vcombine.high %v65, %v65
  %vm78 = vcmask 1043456
  %v79 = vsel %vm78, %v62, 0.0
  %v80 = vsel %vm78, %v70, 0.0
  %v81 = vadd.f32 %v79, %v80
  %v82 = vsel %vm78, %v63, 0.0
  %v83 = vadd.f32 %v81, %v82
  %v84 = vsel %vm78, %v71, 0.0
  %v85 = vadd.f32 %v83, %v84
  %v86 = vsel %vm78, %v64, 0.0
  %v87 = vadd.f32 %v85, %v86
  %v88 = vsel %vm78, %v72, 0.0
  %v89 = vadd.f32 %v87, %v88
  %v90 = vsel %vm78, %v65, 0.0
  %v91 = vadd.f32 %v89, %v90
  %vm92 = vcmask 846848
  %v93 = vsel %vm92, %v73, 0.0
  %v94 = vadd.f32 %v91, %v93
  %95 = vadd.xlane.f32.xlu0 %v94
  %v96 = vpop.xlane.xlu0 %95
  %v97 = vld [vmem:[#allocation2] sm:$0x1]
  %v99 = vlaneseq
  %v100 = vshrl.u32 %v99, 7
  %v101 = vsub.s32 0, %v100
  %v102 = vrot.slane %v97, %v101
  %v104 = vadd.f32 %v96, %v102
  %v105 = vsub.f32 0.0, %v104
  %v106 = vmul.f32 %v105, 1.442695
  %v107 = vpow.pop %v106
  %v108 = vadd.f32 %v107, 1.0
  %v109 = vrcp.pop %v108
  %vm110 = vcmask 3072
  %111 = vst.msk [vmem:[%s3] sm:$0xf] %vm110, %v109
  // Predicated region
  $region14: #{_discriminator_forward.1} parent=0 // pred_check
    _
  $region15: #{_discriminator_forward.1} parent=0 // pred_check_branch
    %113 = sbr.rel (0) target = $region17
  $region16: #{_discriminator_forward.1} parent=0 // pred_region
    _
  $region17: #{_discriminator_forward.1} parent=0 // pred_fallthru
    _
  // Predicated region
  $region18: #{_discriminator_forward.1} parent=0 // pred_check
    _
  $region19: #{_discriminator_forward.1} parent=0 // pred_check_branch
    %115 = sbr.rel (0) target = $region21
  $region20: #{_discriminator_forward.1} parent=0 // pred_region
    _
  $region21: #{_discriminator_forward.1} parent=0 // pred_fallthru
    _

</llo_original>
